<compile_context>
chip_gen: v6e
topology: v6e:2x2x1
jax: 0.10.0
libtpu: 0.0.40
codegen_flags: <defaults>
</compile_context>

<pallas_src>
import functools

import jax
import jax.numpy as jnp
from jax.experimental import pallas as pl
from jax.experimental.pallas import tpu as pltpu


def _round_up(x, m):
    return -(-x // m) * m


# ----------------------------- Pallas kernel -------------------------------

def _actor_kernel(x_ref, w1_ref, b1_ref, w2_ref, b2_ref, o_ref, *, bate):
    # fc1 + ReLU  (bf16 MXU matmul, f32 accumulate, f32 bias-add)
    x = x_ref[...].astype(jnp.bfloat16)
    h = jnp.dot(x, w1_ref[...], preferred_element_type=jnp.float32) + b1_ref[...]
    h = jnp.maximum(h, 0.0)

    # fc2 (bf16 MXU matmul, f32 accumulate)
    logits = jnp.dot(h.astype(jnp.bfloat16), w2_ref[...],
                     preferred_element_type=jnp.float32) + b2_ref[...]
    if bate != 1.0:          # bate is a compile-time constant
        logits = bate * logits

    # numerically-stable softmax over the (unpadded) action dim, all f32
    m = jnp.max(logits, axis=-1, keepdims=True)
    p = jnp.exp(logits - m)
    denom = jnp.sum(p, axis=-1, keepdims=True)
    o_ref[...] = p * pl.reciprocal(denom, approx=True)


# ------------------------------ param prep ----------------------------------

def make_actor_params(w1, b1, w2, b2):
    """One-time parameter prep (hoisted out of the per-call forward).

    w1 : (hidden, s_size)  PyTorch nn.Linear layout (out, in)
    b1 : (hidden,)
    w2 : (a_span, hidden)
    b2 : (a_span,)
    """
    hidden, s_size = w1.shape
    a_span = w2.shape[0]
    hp = _round_up(max(hidden, 128), 128)   # pad hidden dim to a lane multiple

    w1p = jnp.zeros((s_size, hp), jnp.bfloat16).at[:, :hidden].set(
        w1.T.astype(jnp.bfloat16))
    b1p = jnp.zeros((1, hp), jnp.float32).at[:, :hidden].set(
        b1.astype(jnp.float32)[None, :])
    w2p = jnp.zeros((hp, a_span), jnp.bfloat16).at[:hidden, :].set(
        w2.T.astype(jnp.bfloat16))
    b2p = b2.astype(jnp.float32)[None, :]
    return {"w1": w1p, "b1": b1p, "w2": w2p, "b2": b2p}


# ------------------------------- forward ------------------------------------

@functools.partial(jax.jit, static_argnames=("bate", "block_b"))
def actor_forward(s, params, *, bate=1.0, block_b=1024):
    """Pallas-fused Actor forward.  s: (B, s_size) -> (B, a_span) probs (f32)."""
    batch, s_size = s.shape
    w1, b1, w2, b2 = params["w1"], params["b1"], params["w2"], params["b2"]
    hp = w1.shape[1]
    a_span = w2.shape[1]

    # batch tile: sublane multiple, capped at block_b (VMEM-safe on v7x too)
    tb = min(block_b, _round_up(batch, 8))
    bp = _round_up(batch, tb)
    xp = jnp.pad(s, ((0, bp - batch), (0, 0)))   # pad rows only (no-op if aligned)

    kernel = functools.partial(_actor_kernel, bate=float(bate))

    out = pl.pallas_call(
        kernel,
        out_shape=jax.ShapeDtypeStruct((bp, a_span), jnp.float32),
        grid=(bp // tb,),
        in_specs=[
            pl.BlockSpec((tb, s_size), lambda i: (i, 0)),   # activations
            pl.BlockSpec((s_size, hp), lambda i: (0, 0)),   # w1 (VMEM-resident)
            pl.BlockSpec((1, hp),      lambda i: (0, 0)),   # b1
            pl.BlockSpec((hp, a_span), lambda i: (0, 0)),   # w2
            pl.BlockSpec((1, a_span),  lambda i: (0, 0)),   # b2
        ],
        out_specs=pl.BlockSpec((tb, a_span), lambda i: (i, 0)),
        compiler_params=pltpu.CompilerParams(
            dimension_semantics=("parallel",)),
    )(xp, w1, b1, w2, b2)

    return out[:batch]


# ------------------------------ reference -----------------------------------

def actor_reference(s, w1, b1, w2, b2, *, bate=1.0):
    s = s.astype(jnp.float32)
    h = jnp.maximum(s @ w1.T + b1, 0.0)
    logits = bate * (h @ w2.T + b2)
    return jax.nn.softmax(logits, axis=-1)


# --------------------------------- main --------------------------------------

if __name__ == "__main__":
    key = jax.random.PRNGKey(0)
    batch, s_size, hidden, a_span = 2, 8, 10, 4

    k_x, k_w1, k_b1, k_w2, k_b2, k_x2 = jax.random.split(key, 6)

    # deterministic parameter init mirroring the module:
    #   weights ~ Normal(0, 0.1); biases ~ small uniform (PyTorch default-ish)
    x = jax.random.normal(k_x, (batch, s_size), dtype=jnp.float32)
    w1 = 0.1 * jax.random.normal(k_w1, (hidden, s_size), dtype=jnp.float32)
    b1 = jax.random.uniform(k_b1, (hidden,), jnp.float32, -0.1, 0.1)
    w2 = 0.1 * jax.random.normal(k_w2, (a_span, hidden), dtype=jnp.float32)
    b2 = jax.random.uniform(k_b2, (a_span,), jnp.float32, -0.1, 0.1)

    # one-time parameter prep (transpose / cast / pad), outside the hot path
    params = make_actor_params(w1, b1, w2, b2)

    out = jax.block_until_ready(actor_forward(x, params))
    ref = actor_reference(x, w1, b1, w2, b2)
    assert out.shape == (batch, a_span)
    assert jnp.allclose(out, ref, atol=1e-2, rtol=1e-2), (out, ref)
    assert jnp.allclose(jnp.sum(out, axis=-1), 1.0, atol=5e-3)

    # exercise the multi-step batch grid (several tiles, pinned weights)
    x_big = jax.random.normal(k_x2, (40, s_size), dtype=jnp.float32)
    out_big = jax.block_until_ready(actor_forward(x_big, params, block_b=8))
    ref_big = actor_reference(x_big, w1, b1, w2, b2)
    assert out_big.shape == (40, a_span)
    assert jnp.allclose(out_big, ref_big, atol=1e-2, rtol=1e-2)
    assert jnp.allclose(jnp.sum(out_big, axis=-1), 1.0, atol=5e-3)

    print("KERNEL_OK")
</pallas_src>

<mosaic_0001>
module attributes {stable_mosaic.version = 11 : i64} {
  func.func @_actor_kernel(%arg0: i32, %arg1: memref<8x8xf32, #tpu.memory_space<vmem>>, %arg2: memref<8x128xbf16, #tpu.memory_space<vmem>>, %arg3: memref<1x128xf32, #tpu.memory_space<vmem>>, %arg4: memref<128x4xbf16, #tpu.memory_space<vmem>>, %arg5: memref<1x4xf32, #tpu.memory_space<vmem>>, %arg6: memref<8x4xf32, #tpu.memory_space<vmem>>) attributes {dimension_semantics = [#tpu.dimension_semantics<parallel>], iteration_bounds = array<i64: 1>, scalar_prefetch = 0 : i64, scratch_operands = 0 : i64, tpu.core_type = #tpu.core_type<tc>, window_params = [{transform_indices = @transform_0, window_bounds = array<i64: 8, 8>}, {pipeline_mode = #tpu.pipeline_mode<synchronous>, transform_indices = @transform_1, window_bounds = array<i64: 8, 128>}, {pipeline_mode = #tpu.pipeline_mode<synchronous>, transform_indices = @transform_2, window_bounds = array<i64: 1, 128>}, {pipeline_mode = #tpu.pipeline_mode<synchronous>, transform_indices = @transform_3, window_bounds = array<i64: 128, 4>}, {pipeline_mode = #tpu.pipeline_mode<synchronous>, transform_indices = @transform_4, window_bounds = array<i64: 1, 4>}, {transform_indices = @transform_5, window_bounds = array<i64: 8, 4>}]} {
    %c0 = arith.constant 0 : index
    %c0_0 = arith.constant 0 : index
    %0 = vector.load %arg1[%c0, %c0_0] : memref<8x8xf32, #tpu.memory_space<vmem>>, vector<8x8xf32>
    %1 = arith.truncf %0 : vector<8x8xf32> to vector<8x8xbf16>
    %c0_1 = arith.constant 0 : index
    %c0_2 = arith.constant 0 : index
    %2 = vector.load %arg2[%c0_1, %c0_2] : memref<8x128xbf16, #tpu.memory_space<vmem>>, vector<8x128xbf16>
    %cst = arith.constant dense<0.000000e+00> : vector<8x128xf32>
    %3 = tpu.matmul %1, %2, %cst {dimension_numbers = #tpu.dot_dimension_numbers<[1], [0], [0], [1], [0, 0, 1, 1], [], []>} : vector<8x8xbf16>, vector<8x128xbf16>, vector<8x128xf32> -> vector<8x128xf32>
    %c0_3 = arith.constant 0 : index
    %c0_4 = arith.constant 0 : index
    %4 = vector.load %arg3[%c0_3, %c0_4] : memref<1x128xf32, #tpu.memory_space<vmem>>, vector<1x128xf32>
    %5 = vector.broadcast %4 : vector<1x128xf32> to vector<8x128xf32>
    %6 = arith.addf %3, %5 : vector<8x128xf32>
    %cst_5 = arith.constant 0.000000e+00 : f32
    %7 = vector.broadcast %cst_5 : f32 to vector<8x128xf32>
    %8 = arith.maximumf %6, %7 : vector<8x128xf32>
    %9 = arith.truncf %8 : vector<8x128xf32> to vector<8x128xbf16>
    %c0_6 = arith.constant 0 : index
    %c0_7 = arith.constant 0 : index
    %10 = vector.load %arg4[%c0_6, %c0_7] : memref<128x4xbf16, #tpu.memory_space<vmem>>, vector<128x4xbf16>
    %cst_8 = arith.constant dense<0.000000e+00> : vector<8x4xf32>
    %11 = tpu.matmul %9, %10, %cst_8 {dimension_numbers = #tpu.dot_dimension_numbers<[1], [0], [0], [1], [0, 0, 1, 1], [], []>} : vector<8x128xbf16>, vector<128x4xbf16>, vector<8x4xf32> -> vector<8x4xf32>
    %c0_9 = arith.constant 0 : index
    %c0_10 = arith.constant 0 : index
    %12 = vector.load %arg5[%c0_9, %c0_10] : memref<1x4xf32, #tpu.memory_space<vmem>>, vector<1x4xf32>
    %13 = vector.broadcast %12 : vector<1x4xf32> to vector<8x4xf32>
    %14 = arith.addf %11, %13 : vector<8x4xf32>
    %cst_11 = arith.constant dense<0xFF800000> : vector<8xf32>
    %15 = vector.multi_reduction <maximumf>, %14, %cst_11 [1] : vector<8x4xf32> to vector<8xf32>
    %16 = vector.shape_cast %15 : vector<8xf32> to vector<8x1xf32>
    %17 = vector.broadcast %16 : vector<8x1xf32> to vector<8x4xf32>
    %18 = arith.subf %14, %17 : vector<8x4xf32>
    %19 = math.exp %18 : vector<8x4xf32>
    %cst_12 = arith.constant dense<0.000000e+00> : vector<8xf32>
    %20 = vector.multi_reduction <add>, %19, %cst_12 [1] : vector<8x4xf32> to vector<8xf32>
    %21 = vector.shape_cast %20 : vector<8xf32> to vector<8x1xf32>
    %22 = tpu.reciprocal %21 {approx = true} : vector<8x1xf32> -> vector<8x1xf32>
    %23 = vector.broadcast %22 : vector<8x1xf32> to vector<8x4xf32>
    %24 = arith.mulf %19, %23 : vector<8x4xf32>
    %c0_13 = arith.constant 0 : index
    %c0_14 = arith.constant 0 : index
    %25 = vector.load %arg6[%c0_13, %c0_14] : memref<8x4xf32, #tpu.memory_space<vmem>>, vector<8x4xf32>
    tpu.vector_store %arg6[%c0_13, %c0_14], %24 {strides = array<i32>} : memref<8x4xf32, #tpu.memory_space<vmem>>, vector<8x4xf32>,
    return
  }
  func.func @transform_0(%arg0: i32) -> (i32, i32) {
    %c0_i32 = arith.constant 0 : i32
    %c0_i32_0 = arith.constant 0 : i32
    return %arg0, %c0_i32 : i32, i32
  }
  func.func @transform_1(%arg0: i32) -> (i32, i32) {
    %c0_i32 = arith.constant 0 : i32
    %c0_i32_0 = arith.constant 0 : i32
    %c0_i32_1 = arith.constant 0 : i32
    return %c0_i32, %c0_i32_0 : i32, i32
  }
  func.func @transform_2(%arg0: i32) -> (i32, i32) {
    %c0_i32 = arith.constant 0 : i32
    %c0_i32_0 = arith.constant 0 : i32
    %c0_i32_1 = arith.constant 0 : i32
    return %c0_i32, %c0_i32_0 : i32, i32
  }
  func.func @transform_3(%arg0: i32) -> (i32, i32) {
    %c0_i32 = arith.constant 0 : i32
    %c0_i32_0 = arith.constant 0 : i32
    %c0_i32_1 = arith.constant 0 : i32
    return %c0_i32, %c0_i32_0 : i32, i32
  }
  func.func @transform_4(%arg0: i32) -> (i32, i32) {
    %c0_i32 = arith.constant 0 : i32
    %c0_i32_0 = arith.constant 0 : i32
    %c0_i32_1 = arith.constant 0 : i32
    return %c0_i32, %c0_i32_0 : i32, i32
  }
  func.func @transform_5(%arg0: i32) -> (i32, i32) {
    %c0_i32 = arith.constant 0 : i32
    %c0_i32_0 = arith.constant 0 : i32
    return %arg0, %c0_i32 : i32, i32
  }
}

</mosaic_0001>

<llo_original>
// kernel: actor_forward.1
$region0: #{actor_forward.1}
  #allocation0 [shape = 'u32[]', space=smem, size = 0x4, offset = 0x4, fixed_abs, tag = 'smem constant byte address 0x4 - core index']
  #allocation1 [shape = 'u32[144,128]{1,0:T(1,128)}', space=vmem, size = 0x12000, scoped, tag = 'internal scratch']
  %s0 = inlined_call_operand.vmem [shape: f32[8,8], index: 0, kind: input, shape index: {}]
  %s1 = inlined_call_operand.vmem [shape: bf16[8,128], index: 1, kind: input, shape index: {}]
  %s2 = inlined_call_operand.vmem [shape: f32[1,128], index: 2, kind: input, shape index: {}]
  %s3 = inlined_call_operand.vmem [shape: bf16[128,4], index: 3, kind: input, shape index: {}]
  %s4 = inlined_call_operand.vmem [shape: f32[1,4], index: 4, kind: input, shape index: {}]
  %s5 = inlined_call_operand.vmem [shape: f32[8,4], index: 5, kind: output, shape index: {}]
  %s6 = sld [smem:[#allocation0]]
  $region30: #{actor_forward.1} parent=0
    _
  %s8 = ssub.s32 1, %s6
  %s9 = scalar_select 0, %s8, %s6
  // Predicated region
  $region2: #{actor_forward.1} parent=0 // pred_check
    _
  $region3: #{actor_forward.1} parent=0 // pred_check_branch
    %11 = sbr.rel (0) target = $region5
  $region4: #{actor_forward.1} parent=0 // pred_region
    _
  $region5: #{actor_forward.1} parent=0 // pred_fallthru
    _
  // Predicated region
  $region6: #{actor_forward.1} parent=0 // pred_check
    _
  $region7: #{actor_forward.1} parent=0 // pred_check_branch
    %13 = sbr.rel (0) target = $region9
  $region8: #{actor_forward.1} parent=0 // pred_region
    _
  $region9: #{actor_forward.1} parent=0 // pred_fallthru
    _
  // Predicated region
  $region10: #{actor_forward.1} parent=0 // pred_check
    _
  $region11: #{actor_forward.1} parent=0 // pred_check_branch
    %15 = sbr.rel (0) target = $region13
  $region12: #{actor_forward.1} parent=0 // pred_region
    _
  $region13: #{actor_forward.1} parent=0 // pred_fallthru
    _
  // Predicated region
  $region14: #{actor_forward.1} parent=0 // pred_check
    _
  $region15: #{actor_forward.1} parent=0 // pred_check_branch
    %17 = sbr.rel (0) target = $region17
  $region16: #{actor_forward.1} parent=0 // pred_region
    _
  $region17: #{actor_forward.1} parent=0 // pred_fallthru
    _
  // Predicated region
  $region18: #{actor_forward.1} parent=0 // pred_check
    _
  $region19: #{actor_forward.1} parent=0 // pred_check_branch
    %19 = sbr.rel (0) target = $region21
  $region20: #{actor_forward.1} parent=0 // pred_region
    _
  $region21: #{actor_forward.1} parent=0 // pred_fallthru
    _
  %v21 = vld [vmem:[%s0] sm:$0xff]
  %v22 = vpack.c.bf16 %v21, %v21
  %v23 = vld [vmem:[%s1] sm:$0xf]
  %v24 = vld [vmem:[%s2] sm:$0x1]
  %v26 = vlaneseq
  %v27 = vshrl.u32 %v26, 7
  %v28 = vsub.s32 0, %v27
  %v29 = vrot.slane %v24, %v28
  %vm31 = vcmask 64512
  %v33 = vsel %vm31, %v22, 0
  %vm35 = vcmask 1043456
  %v37 = vsel %vm35, %v23, 0
  %39 = vmatprep.subr.bf16.mxu0 0
  %40 = vmatpush1.bf16.msra.mxu0 0
  %41 = vmatprep.subr.bf16.mxu0 0
  %42 = vmatpush1.bf16.msra.mxu0 0
  %43 = vmatprep.subr.bf16.mxu0 0
  %44 = vmatpush1.bf16.msra.mxu0 0
  %45 = vmatprep.subr.bf16.mxu0 0
  %46 = vmatpush1.bf16.msra.mxu0 0
  %47 = vmatprep.subr.bf16.mxu0 0
  %48 = vmatpush1.bf16.msra.mxu0 0
  %49 = vmatprep.subr.bf16.mxu0 0
  %50 = vmatpush1.bf16.msra.mxu0 0
  %51 = vmatprep.subr.bf16.mxu0 0
  %52 = vmatpush1.bf16.msra.mxu0 0
  %53 = vmatprep.subr.bf16.mxu0 0
  %54 = vmatpush1.bf16.msra.mxu0 %v37
  %55 = vmatprep.subr.bf16.mxu0 0
  %56 = vmatpush2.bf16.msra.mxu0 0
  %57 = vmatprep.subr.bf16.mxu0 0
  %58 = vmatpush2.bf16.msra.mxu0 0
  %59 = vmatprep.subr.bf16.mxu0 0
  %60 = vmatpush2.bf16.msra.mxu0 0
  %61 = vmatprep.subr.bf16.mxu0 0
  %62 = vmatpush2.bf16.msra.mxu0 0
  %63 = vmatprep.subr.bf16.mxu0 0
  %64 = vmatpush2.bf16.msra.mxu0 0
  %65 = vmatprep.subr.bf16.mxu0 0
  %66 = vmatpush2.bf16.msra.mxu0 0
  %67 = vmatprep.subr.bf16.mxu0 0
  %68 = vmatpush2.bf16.msra.mxu0 0
  %69 = vmatprep.subr.bf16.mxu0 0
  %70 = vmatpush2.bf16.msra.mxu0 0
  %71 = vmatprep.mubr.bf16.mxu0 0
  %72 = vmatmul.mubr.bf16.gmra.mxu0 %v33
  %v73 = vpop.f32.mrf.mxu0
  %v74 = vadd.f32 %v29, %v73
  %v75 = vpop.f32.mrf.mxu0
  %v76 = vpop.f32.mrf.mxu0
  %v77 = vpop.f32.mrf.mxu0
  %78 = vdwg.mxu0
  %v79 = vmax.f32 %v74, 0.0
  %v80 = vpack.c.bf16 %v79, %v79
  %v81 = vld [vmem:[%s3] sm:$0xf]
  %v82 = vld [vmem:[%s3 + $0x4] sm:$0xf]
  %v83 = vld [vmem:[%s3 + $0x8] sm:$0xf]
  %v84 = vld [vmem:[%s3 + $0xc] sm:$0xf]
  %v85 = vld [vmem:[%s3 + $0x10] sm:$0xf]
  %v86 = vld [vmem:[%s3 + $0x14] sm:$0xf]
  %v87 = vld [vmem:[%s3 + $0x18] sm:$0xf]
  %v88 = vld [vmem:[%s3 + $0x1c] sm:$0xf]
  %v89 = vld [vmem:[%s3 + $0x20] sm:$0xf]
  %v90 = vld [vmem:[%s3 + $0x24] sm:$0xf]
  %v91 = vld [vmem:[%s3 + $0x28] sm:$0xf]
  %v92 = vld [vmem:[%s3 + $0x2c] sm:$0xf]
  %v93 = vld [vmem:[%s3 + $0x30] sm:$0xf]
  %v94 = vld [vmem:[%s3 + $0x34] sm:$0xf]
  %v95 = vld [vmem:[%s3 + $0x38] sm:$0xf]
  %v96 = vld [vmem:[%s3 + $0x3c] sm:$0xf]
  %v97 = vld [vmem:[%s4] sm:$0x1]
  %v99 = vlaneseq
  %v100 = vshrl.u32 %v99, 7
  %v101 = vsub.s32 0, %v100
  %v102 = vrot.slane %v97, %v101
  %v120 = vunpack.c.l.b16 %v81
  %v121 = vunpack.c.l.b16 %v82
  %v122 = vunpack.c.l.b16 %v83
  %v123 = vunpack.c.l.b16 %v84
  %v124 = vunpack.c.l.b16 %v85
  %v125 = vunpack.c.l.b16 %v86
  %v126 = vunpack.c.l.b16 %v87
  %v127 = vunpack.c.l.b16 %v88
  %v128 = vunpack.c.l.b16 %v89
  %v129 = vunpack.c.l.b16 %v90
  %v130 = vunpack.c.l.b16 %v91
  %v131 = vunpack.c.l.b16 %v92
  %v132 = vunpack.c.l.b16 %v93
  %v133 = vunpack.c.l.b16 %v94
  %v134 = vunpack.c.l.b16 %v95
  %v135 = vunpack.c.l.b16 %v96
  %v136 = vpack.c.b16 %v121, %v120
  %v137 = vpack.c.b16 %v123, %v122
  %v138 = vpack.c.b16 %v125, %v124
  %v139 = vpack.c.b16 %v127, %v126
  %v140 = vpack.c.b16 %v129, %v128
  %v141 = vpack.c.b16 %v131, %v130
  %v142 = vpack.c.b16 %v133, %v132
  %v143 = vpack.c.b16 %v135, %v134
  %152 = vmatprep.subr.bf16.mxu0 0
  %153 = vmatpush1.bf16.msra.mxu0 %v143
  %154 = vmatprep.subr.bf16.mxu0 0
  %155 = vmatpush1.bf16.msra.mxu0 %v142
  %156 = vmatprep.subr.bf16.mxu0 0
  %157 = vmatpush1.bf16.msra.mxu0 %v141
  %158 = vmatprep.subr.bf16.mxu0 0
  %159 = vmatpush1.bf16.msra.mxu0 %v140
  %160 = vmatprep.subr.bf16.mxu0 0
  %161 = vmatpush1.bf16.msra.mxu0 %v139
  %162 = vmatprep.subr.bf16.mxu0 0
  %163 = vmatpush1.bf16.msra.mxu0 %v138
  %164 = vmatprep.subr.bf16.mxu0 0
  %165 = vmatpush1.bf16.msra.mxu0 %v137
  %166 = vmatprep.subr.bf16.mxu0 0
  %167 = vmatpush1.bf16.msra.mxu0 %v136
  %168 = vmatprep.subr.bf16.mxu0 0
  %169 = vmatpush2.bf16.msra.mxu0 0
  %170 = vmatprep.subr.bf16.mxu0 0
  %171 = vmatpush2.bf16.msra.mxu0 0
  %172 = vmatprep.subr.bf16.mxu0 0
  %173 = vmatpush2.bf16.msra.mxu0 0
  %174 = vmatprep.subr.bf16.mxu0 0
  %175 = vmatpush2.bf16.msra.mxu0 0
  %176 = vmatprep.subr.bf16.mxu0 0
  %177 = vmatpush2.bf16.msra.mxu0 0
  %178 = vmatprep.subr.bf16.mxu0 0
  %179 = vmatpush2.bf16.msra.mxu0 0
  %180 = vmatprep.subr.bf16.mxu0 0
  %181 = vmatpush2.bf16.msra.mxu0 0
  %182 = vmatprep.subr.bf16.mxu0 0
  %183 = vmatpush2.bf16.msra.mxu0 0
  %184 = vmatprep.mubr.bf16.mxu0 0
  %185 = vmatmul.mubr.bf16.gmra.mxu0 %v80
  %v186 = vpop.f32.mrf.mxu0
  %v187 = vadd.f32 %v102, %v186
  %v188 = vpop.f32.mrf.mxu0
  %v189 = vpop.f32.mrf.mxu0
  %v190 = vpop.f32.mrf.mxu0
  %191 = vdwg.mxu0
  %vm192 = vcmask 31744
  %v193 = vsel %vm192, %v187, -inf
  %194 = vmax.xlane.f32.xlu0 %v193
  %v195 = vpop.xlane.xlu0 %194
  %v196 = vsub.f32 %v187, %v195
  %v197 = vmul.f32 %v196, 1.442695
  %v198 = vpow.pop %v197
  %v199 = vsel %vm192, %v198, 0.0
  %200 = vadd.xlane.f32.xlu0 %v199
  %v201 = vpop.xlane.xlu0 %200
  %v202 = vrcp.pop %v201
  %v203 = vmul.f32 %v198, %v202
  %204 = vst.msk [vmem:[%s5] sm:$0xff] %vm192, %v203
  // Predicated region
  $region22: #{actor_forward.1} parent=0 // pred_check
    _
  $region23: #{actor_forward.1} parent=0 // pred_check_branch
    %206 = sbr.rel (0) target = $region25
  $region24: #{actor_forward.1} parent=0 // pred_region
    _
  $region25: #{actor_forward.1} parent=0 // pred_fallthru
    _
  // Predicated region
  $region26: #{actor_forward.1} parent=0 // pred_check
    _
  $region27: #{actor_forward.1} parent=0 // pred_check_branch
    %208 = sbr.rel (0) target = $region29
  $region28: #{actor_forward.1} parent=0 // pred_region
    _
  $region29: #{actor_forward.1} parent=0 // pred_fallthru
    _

</llo_original>
